<compile_context>
chip_gen: v7x
topology: tpu7x:2x2x1
jax: 0.10.0
libtpu: 0.0.40
codegen_flags: <defaults>
</compile_context>

<pallas_src>
from functools import partial

import numpy as np
import jax
import jax.numpy as jnp
from jax.experimental import pallas as pl
from jax.experimental.pallas import tpu as pltpu

# ----------------------------- configuration ---------------------------------
B = 2             # batch
IN_CHANS = 4      # input channels
H = W = 16        # spatial size
PATCH = 4         # patch_size (kernel == stride)
EMBED_DIM = 32    # embedding dim
GH, GW = H // PATCH, W // PATCH
NUM_PATCHES = GH * GW                     # 16 patches per image
M = B * NUM_PATCHES                       # 32 rows total (batch folded into M)
K = IN_CHANS * PATCH * PATCH              # 64 = flattened patch length
LANE = 128                                # output lane width target


# ------------------------------- kernel --------------------------------------
def patch_embed_kernel(p_ref, w_ref, b_ref, o_ref):
    # Single MXU matmul over all B*num_patches rows at once; bias is a single
    # broadcast add. No grid -> no per-step pipeline overhead. Output last dim
    # is padded to a multiple of 128 by the wrapper -> unmasked full-lane vst.
    o_ref[...] = (
        jnp.dot(p_ref[...], w_ref[...], preferred_element_type=jnp.float32)
        + b_ref[...]
    ).astype(o_ref.dtype)


# ------------------------------- wrapper --------------------------------------
@partial(jax.jit, static_argnames=("patch",))
def patch_embed_forward(x, weight, bias, *, patch=PATCH):
    """x: (B, C, H, W); weight: (E, C, p, p) (PyTorch Conv2d layout); bias: (E,).
    Returns (B, E, H/p, W/p), identical to nn.Conv2d(kernel=stride=p).

    Everything (im2col, matmul kernel, un-pad slice, NCHW epilogue) lives in
    one jit so XLA fuses the layout plumbing and dispatch overhead is paid once.
    """
    Bb, C, Hh, Ww = x.shape
    E = weight.shape[0]
    gh, gw = Hh // patch, Ww // patch
    m = Bb * gh * gw
    k = C * patch * patch
    e_pad = ((E + LANE - 1) // LANE) * LANE   # lane-dense output width

    # im2col (pure layout work, fused into the pallas_call operand via
    # allow_input_fusion): (B, C, gh, p, gw, p) -> (B, gh, gw, C, p, p) -> (m, k)
    patches = x.reshape(Bb, C, gh, patch, gw, patch)
    patches = patches.transpose(0, 2, 4, 1, 3, 5).reshape(m, k)

    # Conv weight (E, C, p, p) -> (k, E); (c, kh, kw) order matches im2col above.
    # Zero-pad E -> e_pad so the kernel's output stores are full-lane.
    w2d = jnp.pad(weight.reshape(E, k).T, ((0, 0), (0, e_pad - E)))
    b2d = jnp.pad(bias.reshape(1, E), ((0, 0), (0, e_pad - E)))

    out = pl.pallas_call(
        patch_embed_kernel,
        out_shape=jax.ShapeDtypeStruct((m, e_pad), x.dtype),
        in_specs=[
            pl.BlockSpec(memory_space=pltpu.MemorySpace.VMEM),  # patches (m, k)
            pl.BlockSpec(memory_space=pltpu.MemorySpace.VMEM),  # weight  (k, e_pad)
            pl.BlockSpec(memory_space=pltpu.MemorySpace.VMEM),  # bias    (1, e_pad)
        ],
        out_specs=pl.BlockSpec(memory_space=pltpu.MemorySpace.VMEM),
        compiler_params=pltpu.CompilerParams(
            # Allow the im2col transpose fusion to feed operand 0 directly.
            allow_input_fusion=[True, False, False],
        ),
    )(patches, w2d, b2d)

    # Drop the lane padding (fused slice) and restore Conv2d NCHW layout to
    # match the PyTorch module's forward exactly.
    # Note: the pallas output is already token-major (B*N, E); a downstream
    # ViT that does .flatten(2).transpose(1,2) could take out[:, :E]
    # .reshape(B, gh*gw, E) directly and skip this transpose entirely.
    out = out[:, :E]
    return out.reshape(Bb, gh, gw, E).transpose(0, 3, 1, 2)


# --------------------------- pure-JAX reference --------------------------------
def patch_embed_reference(x, weight, bias):
    out = jax.lax.conv_general_dilated(
        x, weight,
        window_strides=(PATCH, PATCH),
        padding="VALID",
        dimension_numbers=("NCHW", "OIHW", "NCHW"),
    )
    return out + bias.reshape(1, -1, 1, 1)


# ------------------------------- main ------------------------------------------
if __name__ == "__main__":
    key = jax.random.PRNGKey(0)
    kx, kw, kb = jax.random.split(key, 3)

    x = jax.random.normal(kx, (B, IN_CHANS, H, W), jnp.float32)
    # Conv2d weight/bias (default PyTorch Conv2d init is not reproduced exactly;
    # any values exercise identical arithmetic).
    weight = jax.random.normal(kw, (EMBED_DIM, IN_CHANS, PATCH, PATCH), jnp.float32) * 0.02
    bias = jax.random.normal(kb, (EMBED_DIM,), jnp.float32) * 0.02

    out = jax.block_until_ready(patch_embed_forward(x, weight, bias))
    ref = jax.block_until_ready(patch_embed_reference(x, weight, bias))
    np.testing.assert_allclose(np.asarray(out), np.asarray(ref), atol=2e-4, rtol=2e-4)
    print("KERNEL_OK")
</pallas_src>

<mosaic_0001>
module attributes {stable_mosaic.version = 11 : i64} {
  func.func @patch_embed_kernel(%arg0: memref<32x64xf32, #tpu.memory_space<vmem>>, %arg1: memref<64x128xf32, #tpu.memory_space<vmem>>, %arg2: memref<1x128xf32, #tpu.memory_space<vmem>>, %arg3: memref<32x128xf32, #tpu.memory_space<vmem>>) attributes {dimension_semantics = [], scalar_prefetch = 0 : i64, scratch_operands = 0 : i64, tpu.core_type = #tpu.core_type<tc>} {
    %c0 = arith.constant 0 : index
    %c0_0 = arith.constant 0 : index
    %0 = vector.load %arg0[%c0, %c0_0] : memref<32x64xf32, #tpu.memory_space<vmem>>, vector<32x64xf32>
    %c0_1 = arith.constant 0 : index
    %c0_2 = arith.constant 0 : index
    %1 = vector.load %arg1[%c0_1, %c0_2] : memref<64x128xf32, #tpu.memory_space<vmem>>, vector<64x128xf32>
    %cst = arith.constant dense<0.000000e+00> : vector<32x128xf32>
    %2 = tpu.matmul %0, %1, %cst {dimension_numbers = #tpu.dot_dimension_numbers<[1], [0], [0], [1], [0, 0, 1, 1], [], []>} : vector<32x64xf32>, vector<64x128xf32>, vector<32x128xf32> -> vector<32x128xf32>
    %c0_3 = arith.constant 0 : index
    %c0_4 = arith.constant 0 : index
    %3 = vector.load %arg2[%c0_3, %c0_4] : memref<1x128xf32, #tpu.memory_space<vmem>>, vector<1x128xf32>
    %4 = vector.broadcast %3 : vector<1x128xf32> to vector<32x128xf32>
    %5 = arith.addf %2, %4 : vector<32x128xf32>
    %c0_5 = arith.constant 0 : index
    %c0_6 = arith.constant 0 : index
    %6 = vector.load %arg3[%c0_5, %c0_6] : memref<32x128xf32, #tpu.memory_space<vmem>>, vector<32x128xf32>
    tpu.vector_store %arg3[%c0_5, %c0_6], %5 {strides = array<i32>} : memref<32x128xf32, #tpu.memory_space<vmem>>, vector<32x128xf32>,
    return
  }
}

</mosaic_0001>

<llo_original>
// kernel: patch_embed_forward.1
$region0: #{patch_embed_forward.1}
  #allocation0 [shape = 'u32[]', space=smem, size = 0x4, offset = 0x4, fixed_abs, tag = 'smem constant byte address 0x4 - core index']
  #allocation1 [shape = 'u32[144,128]{1,0:T(1,128)}', space=vmem, size = 0x12000, scoped, tag = 'internal scratch']
  %s0 = inlined_call_operand.vmem [shape: f32[32,64], index: 0, kind: input, shape index: {}]
  %s1 = inlined_call_operand.vmem [shape: f32[64,128], index: 1, kind: input, shape index: {}]
  %s2 = inlined_call_operand.vmem [shape: f32[1,128], index: 2, kind: input, shape index: {}]
  %s3 = inlined_call_operand.hbm [shape: f32[32,128], index: 3, kind: output, shape index: {}]
  %s4 = sld [smem:[#allocation0]]
  $region22: #{patch_embed_forward.1} parent=0
    _
  %s6 = ssub.s32 1, %s4
  %s7 = scalar_select 0, %s6, %s4
  $region1: #{patch_embed_forward.1} parent=0
    #allocation2 [shape = 'u8[16384]{0}', space=vmem, size = 0x4000, scoped, tag = 'output window, operand 0, single buffered']
    #allocation3 [shape = 's32[1]{0}', space=sflag, size = 0x4, scoped, tag = 'scoped memory for patch_embed_forward.1']
    %8 = vsyncpa [#allocation3], 0
    // Predicated region
    $region2: #{patch_embed_forward.1} parent=1 // pred_check
      _
    $region3: #{patch_embed_forward.1} parent=1 // pred_check_branch
      %10 = sbr.rel (0) target = $region5
    $region4: #{patch_embed_forward.1} parent=1 // pred_region
      _
    $region5: #{patch_embed_forward.1} parent=1 // pred_fallthru
      _
    // Predicated region
    $region6: #{patch_embed_forward.1} parent=1 // pred_check
      _
    $region7: #{patch_embed_forward.1} parent=1 // pred_check_branch
      %12 = sbr.rel (0) target = $region9
    $region8: #{patch_embed_forward.1} parent=1 // pred_region
      _
    $region9: #{patch_embed_forward.1} parent=1 // pred_fallthru
      _
    // Predicated region
    $region10: #{patch_embed_forward.1} parent=1 // pred_check
      _
    $region11: #{patch_embed_forward.1} parent=1 // pred_check_branch
      %14 = sbr.rel (0) target = $region13
    $region12: #{patch_embed_forward.1} parent=1 // pred_region
      _
    $region13: #{patch_embed_forward.1} parent=1 // pred_fallthru
      _
    %v15 = vld [vmem:[%s0] sm:$0xff]
    %v16 = vld [vmem:[%s0 + $0x8] sm:$0xff]
    %v17 = vld [vmem:[%s0 + $0x10] sm:$0xff]
    %v18 = vld [vmem:[%s0 + $0x18] sm:$0xff]
    %v19 = vld [vmem:[%s1] sm:$0xff]
    %v20 = vld [vmem:[%s1 + $0x8] sm:$0xff]
    %v21 = vld [vmem:[%s1 + $0x10] sm:$0xff]
    %v22 = vld [vmem:[%s1 + $0x18] sm:$0xff]
    %v23 = vld [vmem:[%s1 + $0x20] sm:$0xff]
    %v24 = vld [vmem:[%s1 + $0x28] sm:$0xff]
    %v25 = vld [vmem:[%s1 + $0x30] sm:$0xff]
    %v26 = vld [vmem:[%s1 + $0x38] sm:$0xff]
    %v27 = vld [vmem:[%s2] sm:$0x1]
    %v29 = vlaneseq
    %v30 = vshrl.u32 %v29, 7
    %v31 = vsub.s32 0, %v30
    %v32 = vrot.slane %v27, %v31
    %vm34 = vcmask 523264
    %v36 = vsel %vm34, %v15, 0
    %v39 = vsel %vm34, %v16, 0
    %v42 = vsel %vm34, %v17, 0
    %v45 = vsel %vm34, %v18, 0
    %47 = vmatprep.subr.mxu0 0.0
    %48 = vmatpush1.msra.mxu0 %v19
    %49 = vmatprep.subr.mxu0 0.0
    %50 = vmatpush1.msra.mxu0 %v20
    %51 = vmatprep.subr.mxu0 0.0
    %52 = vmatpush1.msra.mxu0 %v21
    %53 = vmatprep.subr.mxu0 0.0
    %54 = vmatpush1.msra.mxu0 %v22
    %55 = vmatprep.subr.mxu0 0.0
    %56 = vmatpush1.msra.mxu0 %v23
    %57 = vmatprep.subr.mxu0 0.0
    %58 = vmatpush1.msra.mxu0 %v24
    %59 = vmatprep.subr.mxu0 0.0
    %60 = vmatpush1.msra.mxu0 %v25
    %61 = vmatprep.subr.mxu0 0.0
    %62 = vmatpush1.msra.mxu0 %v26
    %63 = vmatprep.subr.mxu0 0.0
    %64 = vmatpush1.msra.mxu0 0.0
    %65 = vmatprep.subr.mxu0 0.0
    %66 = vmatpush1.msra.mxu0 0.0
    %67 = vmatprep.subr.mxu0 0.0
    %68 = vmatpush1.msra.mxu0 0.0
    %69 = vmatprep.subr.mxu0 0.0
    %70 = vmatpush1.msra.mxu0 0.0
    %71 = vmatprep.subr.mxu0 0.0
    %72 = vmatpush1.msra.mxu0 0.0
    %73 = vmatprep.subr.mxu0 0.0
    %74 = vmatpush1.msra.mxu0 0.0
    %75 = vmatprep.subr.mxu0 0.0
    %76 = vmatpush1.msra.mxu0 0.0
    %77 = vmatprep.subr.mxu0 0.0
    %78 = vmatpush1.msra.mxu0 0.0
    %79 = vmatprep.subr.mxu0 0.0
    %80 = vmatpush1.msra.mxu0 0.0
    %81 = vmatprep.subr.mxu0 0.0
    %82 = vmatpush1.msra.mxu0 0.0
    %83 = vmatprep.subr.mxu0 0.0
    %84 = vmatpush1.msra.mxu0 0.0
    %85 = vmatprep.subr.mxu0 0.0
    %86 = vmatpush1.msra.mxu0 0.0
    %87 = vmatprep.subr.mxu0 0.0
    %88 = vmatpush1.msra.mxu0 0.0
    %89 = vmatprep.subr.mxu0 0.0
    %90 = vmatpush1.msra.mxu0 0.0
    %91 = vmatprep.subr.mxu0 0.0
    %92 = vmatpush1.msra.mxu0 0.0
    %93 = vmatprep.subr.mxu0 0.0
    %94 = vmatpush1.msra.mxu0 0.0
    %95 = vmatprep.subr.mxu0 0.0
    %96 = vmatpush1.msra.mxu0 0.0
    %97 = vmatprep.subr.mxu0 0.0
    %98 = vmatpush1.msra.mxu0 0.0
    %99 = vmatprep.subr.mxu0 0.0
    %100 = vmatpush1.msra.mxu0 0.0
    %101 = vmatprep.subr.mxu0 0.0
    %102 = vmatpush1.msra.mxu0 0.0
    %103 = vmatprep.subr.mxu0 0.0
    %104 = vmatpush1.msra.mxu0 0.0
    %105 = vmatprep.subr.mxu0 0.0
    %106 = vmatpush1.msra.mxu0 0.0
    %107 = vmatprep.subr.mxu0 0.0
    %108 = vmatpush1.msra.mxu0 0.0
    %109 = vmatprep.subr.mxu0 0.0
    %110 = vmatpush1.msra.mxu0 0.0
    %111 = vmatprep.mubr.f32.mxu0 0.0
    %112 = vmatmul.mubr.f32.gmra.mrb[0].mxu0 %v36
    %v113 = vpop.f32.mrb[0].mxu0
    %v114 = vadd.f32 %v32, %v113
    %v115 = vpop.f32.mrb[0].mxu0
    %116 = vmatprep.mubr.f32.mxu0 0.0
    %117 = vmatmul.mubr.f32.gmra.mrb[0].mxu0 %v39
    %v118 = vpop.f32.mrb[0].mxu0
    %v119 = vadd.f32 %v32, %v118
    %v120 = vpop.f32.mrb[0].mxu0
    %121 = vmatprep.mubr.f32.mxu0 0.0
    %122 = vmatmul.mubr.f32.gmra.mrb[0].mxu0 %v42
    %v123 = vpop.f32.mrb[0].mxu0
    %v124 = vadd.f32 %v32, %v123
    %v125 = vpop.f32.mrb[0].mxu0
    %126 = vmatprep.mubr.f32.mxu0 0.0
    %127 = vmatmul.mubr.f32.gmra.mrb[0].mxu0 %v45
    %v128 = vpop.f32.mrb[0].mxu0
    %v129 = vadd.f32 %v32, %v128
    %v130 = vpop.f32.mrb[0].mxu0
    %131 = vdwg.mxu0
    %132 = vst [vmem:[#allocation2] sm:$0xff] %v114
    %133 = vst [vmem:[#allocation2 + $0x8] sm:$0xff] %v119
    %134 = vst [vmem:[#allocation2 + $0x10] sm:$0xff] %v124
    %135 = vst [vmem:[#allocation2 + $0x18] sm:$0xff] %v129
    // Predicated region
    $region14: #{patch_embed_forward.1} parent=1 // pred_check
      _
    $region15: #{patch_embed_forward.1} parent=1 // pred_check_branch
      %137 = sbr.rel (0) target = $region17
    $region16: #{patch_embed_forward.1} parent=1 // pred_region
      %s139 = ssub.s32 512, 512
      %140 = vsyncadd [#allocation3], %s139
      %s141 = sshll.u32 [#allocation2], 4
      %s142 = int_to_ptr.vmem [resolvable:$true] %s141
      %147 = dma.vmem_to_hbm [thread:$0]  %s142, 512, %s3, [#allocation3], 128, 128, 8
    $region17: #{patch_embed_forward.1} parent=1 // pred_fallthru
      _
    // Predicated region
    $region18: #{patch_embed_forward.1} parent=1 // pred_check
      _
    $region19: #{patch_embed_forward.1} parent=1 // pred_check_branch
      %149 = sbr.rel (0) target = $region21
    $region20: #{patch_embed_forward.1} parent=1 // pred_region
      %150 = dma.done [#allocation3], 512
    $region21: #{patch_embed_forward.1} parent=1 // pred_fallthru
      _
    %151 = vsyncpa [#allocation3], 1

</llo_original>
